<compile_context>
chip_gen: v6e
topology: v6e:2x2x1
jax: 0.10.0
libtpu: 0.0.40
codegen_flags: <defaults>
</compile_context>

<pallas_src>
import math

import jax
import jax.numpy as jnp
from jax import lax
from jax.experimental import pallas as pl
from jax.experimental.pallas import tpu as pltpu

SMOOTH = 1e-10      # softDiceLoss._dice_loss smooth
_LANES = 128
_MIB = 1024 * 1024


def _make_dice_kernel(C, TR, W, CH, R, ragged):
    """Builds the per-(batch, row-tile) kernel.

    x_ref / t_ref : (1, C, TR, W) blocks in their native dtype.
    o_ref         : (1, 1, 3, C, W) f32 partial sums for this tile:
                    plane 0 = sum(x*t), 1 = sum(x*x), 2 = sum(t*t) over rows.
    """
    assert TR % CH == 0
    n_chunks = TR // CH
    n_tiles = -(-R // TR)

    def accumulate(x_ref, t_ref, o_ref, valid_rows):
        def chunk(i, carry):
            axt, axx, att = carry
            r0 = i * CH
            if not isinstance(r0, int):
                r0 = pl.multiple_of(r0, 8)
            x = x_ref[0, :, pl.ds(r0, CH), :].astype(jnp.float32)   # (C, CH, W)
            t = t_ref[0, :, pl.ds(r0, CH), :].astype(jnp.float32)
            if valid_rows is not None:
                # Ragged final row-tile: rows >= valid are DMA-clipped garbage
                # (Pallas does not zero-fill OOB rows) -> select them to zero.
                rows = r0 + lax.broadcasted_iota(jnp.int32, (1, CH, 1), 1)
                keep = rows < valid_rows
                x = jnp.where(keep, x, 0.0)
                t = jnp.where(keep, t, 0.0)
            # TODO(synk): on v7x with bf16 inputs the row reduction could be
            # offloaded to the idle MXU (ones @ chunk); kept on the VPU here.
            axt = axt + jnp.sum(x * t, axis=1)
            axx = axx + jnp.sum(x * x, axis=1)
            att = att + jnp.sum(t * t, axis=1)
            return axt, axx, att

        zero = jnp.zeros((C, W), jnp.float32)
        if n_chunks == 1:
            axt, axx, att = chunk(0, (zero, zero, zero))
        else:
            axt, axx, att = lax.fori_loop(0, n_chunks, chunk,
                                          (zero, zero, zero), unroll=2)
        o_ref[0, 0, 0] = axt
        o_ref[0, 0, 1] = axx
        o_ref[0, 0, 2] = att

    def kernel(x_ref, t_ref, o_ref):
        if not ragged:
            accumulate(x_ref, t_ref, o_ref, None)
        else:
            k = pl.program_id(1)

            @pl.when(k != n_tiles - 1)
            def _():
                accumulate(x_ref, t_ref, o_ref, None)

            @pl.when(k == n_tiles - 1)
            def _():
                accumulate(x_ref, t_ref, o_ref, R - k * TR)

    return kernel


def soft_dice_loss(inputs, target):
    """Equivalent of softDiceLoss(n_classes=C).forward(inputs, target)."""
    assert inputs.shape == target.shape, "predict & target shape do not match"
    assert inputs.ndim >= 2
    N, C = inputs.shape[0], inputs.shape[1]
    spatial = inputs.shape[2:]

    # Canonical (N, C, R, W) view with the original trailing dim as the lane
    # axis -- no jnp.pad and (for the common NCHW case) no relayout copy.
    if len(spatial) >= 2:
        R = math.prod(spatial[:-1])
        W = spatial[-1]
        x = inputs.reshape(N, C, R, W)
        t = target.reshape(N, C, R, W)
    elif len(spatial) == 1:
        # TODO(synk): rank-3 inputs take a (<=127 elem) zero pad up to a lane
        # multiple; zero padding is exact for all three sums.
        L = spatial[0]
        Lp = -(-L // _LANES) * _LANES
        x, t = inputs, target
        if Lp != L:
            x = jnp.pad(x, ((0, 0), (0, 0), (0, Lp - L)))
            t = jnp.pad(t, ((0, 0), (0, 0), (0, Lp - L)))
        R, W = Lp // _LANES, _LANES
        x = x.reshape(N, C, R, W)
        t = t.reshape(N, C, R, W)
    else:
        R, W = 1, 1
        x = inputs.reshape(N, C, 1, 1)
        t = target.reshape(N, C, 1, 1)

    itemsize = x.dtype.itemsize
    sub = max(8, 32 // max(1, itemsize))        # 8 f32 / 16 bf16 / 32 int8
    w_lanes = -(-W // _LANES) * _LANES

    # Inner row-chunk: keep the f32 chunk copies of x and t within ~96 KiB so
    # the single-pass accumulation stays in vregs (no VMEM spill re-walks).
    ch = (96 * 1024) // max(1, 2 * C * w_lanes * 4)
    ch = max(sub, min(64, (ch // sub) * sub))

    # Row-tile size from a per-generation VMEM budget: 2 inputs x 2 pipeline
    # buffers must fit comfortably (v7x has only 64 MiB/TC; v5e/v6e have 128).
    try:
        vmem_cap = int(pltpu.get_tpu_info().vmem_capacity_bytes)
    except Exception:
        vmem_cap = 64 * _MIB
    per_block_budget = min(vmem_cap // 2, 32 * _MIB) // 4

    if R < ch:
        tr = R                      # whole slab per step; block dims == array dims
        ch_eff = R
    else:
        tr = min(R, max(sub, per_block_budget // (C * w_lanes * itemsize)))
        want_tiles = -(-4 // N)     # keep >= ~4 grid steps for v7x's 2 TCs
        if want_tiles > 1:
            tr = min(tr, -(-R // want_tiles))
        tr = max(ch, (tr // ch) * ch)
        ch_eff = ch
    n_tiles = -(-R // tr)
    ragged = (R % tr) != 0

    # Explicit VMEM limit: actual double-buffered footprint + headroom.
    tr_pad = -(-tr // sub) * sub
    in_block = C * tr_pad * w_lanes * itemsize
    out_block = 3 * (-(-C // 8) * 8) * w_lanes * 4
    vmem_limit = int(4 * in_block + 2 * out_block + 8 * _MIB)

    kernel = _make_dice_kernel(C, tr, W, ch_eff, R, ragged)
    partial = pl.pallas_call(
        kernel,
        out_shape=jax.ShapeDtypeStruct((N, n_tiles, 3, C, W), jnp.float32),
        grid=(N, n_tiles),
        in_specs=[
            pl.BlockSpec((1, C, tr, W), lambda n, k: (n, 0, k, 0)),
            pl.BlockSpec((1, C, tr, W), lambda n, k: (n, 0, k, 0)),
        ],
        out_specs=pl.BlockSpec((1, 1, 3, C, W), lambda n, k: (n, k, 0, 0, 0)),
        compiler_params=pltpu.CompilerParams(
            dimension_semantics=("parallel", "parallel"),
            vmem_limit_bytes=vmem_limit,
        ),
    )(x, t)

    # Tiny finalization in plain JAX: (N, tiles, 3, C, W) partials -> scalar.
    sums = jnp.sum(partial, axis=(0, 1, 4))                 # (3, C)
    intersect, z_sum, y_sum = sums[0], sums[1], sums[2]
    dice = (2.0 * intersect + SMOOTH) / (z_sum + y_sum + SMOOTH)
    return jnp.sum(1.0 - dice) / C


def _reference(inputs, target, n_classes):
    # Pure-JAX reference mirroring the PyTorch module exactly.
    smooth = 1e-10
    loss = 0.0
    for i in range(n_classes):
        score = inputs[:, i].astype(jnp.float32)
        tgt = target[:, i].astype(jnp.float32)
        intersect = jnp.sum(score * tgt)
        y_sum = jnp.sum(tgt * tgt)
        z_sum = jnp.sum(score * score)
        dice = (2.0 * intersect + smooth) / (z_sum + y_sum + smooth)
        loss = loss + (1.0 - dice)
    return loss / n_classes


if __name__ == "__main__":
    key = jax.random.PRNGKey(0)

    def make_case(case_key, n, c, h, w):
        k1, k2 = jax.random.split(case_key)
        logits = jax.random.normal(k1, (n, c, h, w), dtype=jnp.float32)
        probs = jax.nn.softmax(logits, axis=1)                  # soft predictions
        labels = jax.random.randint(k2, (n, h, w), 0, c)
        onehot = jnp.transpose(jax.nn.one_hot(labels, c, dtype=jnp.float32),
                               (0, 3, 1, 2))                    # (n, c, h, w)
        return probs, onehot

    cases = [
        (2, 4, 16, 16),    # tiny: single whole-block path
        (2, 4, 96, 64),    # chunked row tiles, multi-step grid, aligned rows
        (1, 5, 61, 130),   # ragged last row-tile (in-kernel mask), W > 128
    ]
    for case_key, (n, c, h, w) in zip(jax.random.split(key, len(cases)), cases):
        probs, onehot = make_case(case_key, n, c, h, w)
        out = jax.block_until_ready(soft_dice_loss(probs, onehot))
        ref = _reference(probs, onehot, c)
        assert jnp.allclose(out, ref, rtol=1e-5, atol=1e-6), ((n, c, h, w), out, ref)
    print("KERNEL_OK")
</pallas_src>

<mosaic_0001>
module attributes {stable_mosaic.version = 11 : i64} {
  func.func @kernel(%arg0: i32, %arg1: i32, %arg2: memref<1x4x16x16xf32, #tpu.memory_space<vmem>>, %arg3: memref<1x4x16x16xf32, #tpu.memory_space<vmem>>, %arg4: memref<1x1x3x4x16xf32, #tpu.memory_space<vmem>>) attributes {dimension_semantics = [#tpu.dimension_semantics<parallel>, #tpu.dimension_semantics<parallel>], iteration_bounds = array<i64: 2, 1>, scalar_prefetch = 0 : i64, scratch_operands = 0 : i64, tpu.core_type = #tpu.core_type<tc>, window_params = [{transform_indices = @transform_0, window_bounds = array<i64: 1, 4, 16, 16>}, {transform_indices = @transform_1, window_bounds = array<i64: 1, 4, 16, 16>}, {transform_indices = @transform_2, window_bounds = array<i64: 1, 1, 3, 4, 16>}]} {
    %cst = arith.constant 0.000000e+00 : f32
    %0 = vector.broadcast %cst : f32 to vector<4x16xf32>
    %c0 = arith.constant 0 : index
    %c0_0 = arith.constant 0 : index
    %c0_1 = arith.constant 0 : index
    %c0_2 = arith.constant 0 : index
    %1 = vector.load %arg2[%c0, %c0_0, %c0_1, %c0_2] : memref<1x4x16x16xf32, #tpu.memory_space<vmem>>, vector<1x4x16x16xf32>
    %2 = vector.shape_cast %1 : vector<1x4x16x16xf32> to vector<4x16x16xf32>
    %c0_3 = arith.constant 0 : index
    %c0_4 = arith.constant 0 : index
    %c0_5 = arith.constant 0 : index
    %c0_6 = arith.constant 0 : index
    %3 = vector.load %arg3[%c0_3, %c0_4, %c0_5, %c0_6] : memref<1x4x16x16xf32, #tpu.memory_space<vmem>>, vector<1x4x16x16xf32>
    %4 = vector.shape_cast %3 : vector<1x4x16x16xf32> to vector<4x16x16xf32>
    %5 = arith.mulf %2, %4 : vector<4x16x16xf32>
    %cst_7 = arith.constant dense<0.000000e+00> : vector<4x16xf32>
    %6 = vector.multi_reduction <add>, %5, %cst_7 [1] : vector<4x16x16xf32> to vector<4x16xf32>
    %7 = arith.addf %0, %6 : vector<4x16xf32>
    %8 = arith.mulf %2, %2 : vector<4x16x16xf32>
    %cst_8 = arith.constant dense<0.000000e+00> : vector<4x16xf32>
    %9 = vector.multi_reduction <add>, %8, %cst_8 [1] : vector<4x16x16xf32> to vector<4x16xf32>
    %10 = arith.addf %0, %9 : vector<4x16xf32>
    %11 = arith.mulf %4, %4 : vector<4x16x16xf32>
    %cst_9 = arith.constant dense<0.000000e+00> : vector<4x16xf32>
    %12 = vector.multi_reduction <add>, %11, %cst_9 [1] : vector<4x16x16xf32> to vector<4x16xf32>
    %13 = arith.addf %0, %12 : vector<4x16xf32>
    %c0_10 = arith.constant 0 : index
    %c0_11 = arith.constant 0 : index
    %c0_12 = arith.constant 0 : index
    %c0_13 = arith.constant 0 : index
    %c0_14 = arith.constant 0 : index
    %14 = vector.load %arg4[%c0_10, %c0_11, %c0_12, %c0_13, %c0_14] : memref<1x1x3x4x16xf32, #tpu.memory_space<vmem>>, vector<1x1x1x4x16xf32>
    %15 = vector.shape_cast %14 : vector<1x1x1x4x16xf32> to vector<4x16xf32>
    %16 = vector.shape_cast %7 : vector<4x16xf32> to vector<1x1x1x4x16xf32>
    tpu.vector_store %arg4[%c0_10, %c0_11, %c0_12, %c0_13, %c0_14], %16 {strides = array<i32>} : memref<1x1x3x4x16xf32, #tpu.memory_space<vmem>>, vector<1x1x1x4x16xf32>,
    %c0_15 = arith.constant 0 : index
    %c0_16 = arith.constant 0 : index
    %c1 = arith.constant 1 : index
    %c0_17 = arith.constant 0 : index
    %c0_18 = arith.constant 0 : index
    %17 = vector.load %arg4[%c0_15, %c0_16, %c1, %c0_17, %c0_18] : memref<1x1x3x4x16xf32, #tpu.memory_space<vmem>>, vector<1x1x1x4x16xf32>
    %18 = vector.shape_cast %17 : vector<1x1x1x4x16xf32> to vector<4x16xf32>
    %19 = vector.shape_cast %10 : vector<4x16xf32> to vector<1x1x1x4x16xf32>
    tpu.vector_store %arg4[%c0_15, %c0_16, %c1, %c0_17, %c0_18], %19 {strides = array<i32>} : memref<1x1x3x4x16xf32, #tpu.memory_space<vmem>>, vector<1x1x1x4x16xf32>,
    %c0_19 = arith.constant 0 : index
    %c0_20 = arith.constant 0 : index
    %c2 = arith.constant 2 : index
    %c0_21 = arith.constant 0 : index
    %c0_22 = arith.constant 0 : index
    %20 = vector.load %arg4[%c0_19, %c0_20, %c2, %c0_21, %c0_22] : memref<1x1x3x4x16xf32, #tpu.memory_space<vmem>>, vector<1x1x1x4x16xf32>
    %21 = vector.shape_cast %20 : vector<1x1x1x4x16xf32> to vector<4x16xf32>
    %22 = vector.shape_cast %13 : vector<4x16xf32> to vector<1x1x1x4x16xf32>
    tpu.vector_store %arg4[%c0_19, %c0_20, %c2, %c0_21, %c0_22], %22 {strides = array<i32>} : memref<1x1x3x4x16xf32, #tpu.memory_space<vmem>>, vector<1x1x1x4x16xf32>,
    return
  }
  func.func @transform_0(%arg0: i32, %arg1: i32) -> (i32, i32, i32, i32) {
    %c0_i32 = arith.constant 0 : i32
    %c0_i32_0 = arith.constant 0 : i32
    %c0_i32_1 = arith.constant 0 : i32
    return %arg0, %c0_i32, %arg1, %c0_i32_0 : i32, i32, i32, i32
  }
  func.func @transform_1(%arg0: i32, %arg1: i32) -> (i32, i32, i32, i32) {
    %c0_i32 = arith.constant 0 : i32
    %c0_i32_0 = arith.constant 0 : i32
    %c0_i32_1 = arith.constant 0 : i32
    return %arg0, %c0_i32, %arg1, %c0_i32_0 : i32, i32, i32, i32
  }
  func.func @transform_2(%arg0: i32, %arg1: i32) -> (i32, i32, i32, i32, i32) {
    %c0_i32 = arith.constant 0 : i32
    %c0_i32_0 = arith.constant 0 : i32
    %c0_i32_1 = arith.constant 0 : i32
    %c0_i32_2 = arith.constant 0 : i32
    return %arg0, %arg1, %c0_i32, %c0_i32_0, %c0_i32_1 : i32, i32, i32, i32, i32
  }
}

</mosaic_0001>

<llo_original>
// kernel: tpu_custom_call.1
$region0: #{tpu_custom_call.1}
  #allocation0 [shape = 'u32[]', space=smem, size = 0x4, offset = 0x4, fixed_abs, tag = 'smem constant byte address 0x4 - core index']
  #allocation1 [shape = 'u32[144,128]{1,0:T(1,128)}', space=vmem, size = 0x12000, scoped, tag = 'internal scratch']
  %s0 = inlined_call_operand.hbm [shape: f32[2,4,16,16], index: 0, kind: input, shape index: {}]
  %s1 = inlined_call_operand.hbm [shape: f32[2,4,16,16], index: 1, kind: input, shape index: {}]
  %s2 = inlined_call_operand.hbm [shape: f32[2,1,3,4,16], index: 2, kind: output, shape index: {}]
  %s3 = sld [smem:[#allocation0]]
  $region49: #{tpu_custom_call.1} parent=0
    _
  %s5 = ssub.s32 1, %s3
  %s6 = scalar_select 0, %s5, %s3
  $region1: #{tpu_custom_call.1} parent=0
    #allocation2 [shape = 'u8[65536]{0}', space=vmem, size = 0x10000, scoped, tag = 'input window, operand 0']
    #allocation3 [shape = 's32[2]{0}', space=sflag, size = 0x8, scoped, tag = 'scoped memory for tpu_custom_call.1']
    #allocation4 [shape = 's32[2]{0}', space=sflag, size = 0x8, scoped, tag = 'scoped memory for tpu_custom_call.1']
    #allocation5 [shape = 'u8[65536]{0}', space=vmem, size = 0x10000, scoped, tag = 'input window, operand 1']
    #allocation6 [shape = 's32[2]{0}', space=sflag, size = 0x8, scoped, tag = 'scoped memory for tpu_custom_call.1']
    #allocation7 [shape = 'u8[12288]{0}', space=vmem, size = 0x3000, scoped, tag = 'output window, operand 0']
    %7 = vsyncpa [#allocation3], 0
    %s8 = scalar_lea.sflag [#allocation3], 1
    %9 = vsyncpa %s8, 0
    %10 = vsyncpa [#allocation6], 0
    %s11 = scalar_lea.sflag [#allocation6], 1
    %12 = vsyncpa %s11, 0
    %13 = vsyncpa [#allocation4], 0
    %s14 = scalar_lea.sflag [#allocation4], 1
    %15 = vsyncpa %s14, 0
    loop: start=0, step=1, limit=4
    $region2: #{tpu_custom_call.1} parent=1 // loop_pre_header
      _
    $region3: #{tpu_custom_call.1} parent=1 // loop_header
      %s17 = sphi 0, %s21
      %p18 = scmp.ge.s32.totalorder %s17, 4
      %s24 = sphi 0, %s36
      %s25 = sphi 0, %s32
      %s26 = sphi 0, %s24
      %s27 = sphi 0, %s25
      %s28 = sphi 0, %s26
      %s29 = sphi 0, %s27
      %s41 = sphi 0, %s43
      %s44 = sphi 0, %s41
      %s45 = sphi 0, %s44
      %s61 = sphi 0, %s45
      %s69 = sphi 0, %s71
      %s72 = sphi 0, %s69
      %s73 = sphi 0, %s72
      %s89 = sphi 0, %s73
      %s97 = sphi 0, %s99
      %s100 = sphi 0, %s97
      %s101 = sphi 0, %s100
      %s117 = sphi 0, %s101
    $region4: #{tpu_custom_call.1} parent=1 // loop_header_branch
      %20 = sbr.rel (%p18) target = $region8
    $region5: #{tpu_custom_call.1} parent=1 // loop_body
      %s22 = ssub.s32 %s17, 1
      %s23 = ssub.s32 %s17, 2
      %s30 = sadd.s32 1, %s25
      %p31 = scmp.ge.s32.totalorder %s30, 1
      %s32 = scalar_select %p31, 0, %s30
      %s33 = sadd.s32 1, %s24
      %s34 = scalar_select %p31, %s33, %s24
      %p35 = scmp.ge.s32.totalorder %s34, 2
      %s36 = scalar_select %p35, 0, %s34
      %s37 = ssub.s32 %s24, %s36
      %s38 = ssub.s32 %s25, %s32
      %s39 = sor.u32 %s37, %s38
      %p40 = scmp.eq.s32.totalorder %s39, 0
      %s42 = sadd.s32 %s41, 1
      %s43 = scalar_select %p40, %s41, %s42
      %p46 = pneg %p40
      %p47 = scmp.eq.s32.totalorder %s17, 1
      %p48 = por %p46, %p47
      %p49 = scmp.ne.s32.totalorder %s41, %s44
      %p50 = scmp.eq.s32.totalorder %s17, 0
      %p51 = por %p49, %p50
      %p52 = scmp.ne.s32.totalorder %s41, %s44
      %p53 = scmp.eq.s32.totalorder %s22, 1
      %p54 = por %p52, %p53
      %p55 = scmp.ne.s32.totalorder %s44, %s45
      %p56 = scmp.eq.s32.totalorder %s22, 0
      %p57 = por %p55, %p56
      %p58 = scmp.ne.s32.totalorder %s44, %s45
      %p59 = scmp.eq.s32.totalorder %s23, 1
      %p60 = por %p58, %p59
      %p62 = scmp.ne.s32.totalorder %s45, %s61
      %p63 = scmp.eq.s32.totalorder %s23, 0
      %p64 = por %p62, %p63
      %s65 = ssub.s32 %s24, %s36
      %s66 = ssub.s32 %s25, %s32
      %s67 = sor.u32 %s65, %s66
      %p68 = scmp.eq.s32.totalorder %s67, 0
      %s70 = sadd.s32 %s69, 1
      %s71 = scalar_select %p68, %s69, %s70
      %p74 = pneg %p68
      %p75 = scmp.eq.s32.totalorder %s17, 1
      %p76 = por %p74, %p75
      %p77 = scmp.ne.s32.totalorder %s69, %s72
      %p78 = scmp.eq.s32.totalorder %s17, 0
      %p79 = por %p77, %p78
      %p80 = scmp.ne.s32.totalorder %s69, %s72
      %p81 = scmp.eq.s32.totalorder %s22, 1
      %p82 = por %p80, %p81
      %p83 = scmp.ne.s32.totalorder %s72, %s73
      %p84 = scmp.eq.s32.totalorder %s22, 0
      %p85 = por %p83, %p84
      %p86 = scmp.ne.s32.totalorder %s72, %s73
      %p87 = scmp.eq.s32.totalorder %s23, 1
      %p88 = por %p86, %p87
      %p90 = scmp.ne.s32.totalorder %s73, %s89
      %p91 = scmp.eq.s32.totalorder %s23, 0
      %p92 = por %p90, %p91
      %s93 = ssub.s32 %s24, %s36
      %s94 = ssub.s32 %s25, %s32
      %s95 = sor.u32 %s93, %s94
      %p96 = scmp.eq.s32.totalorder %s95, 0
      %s98 = sadd.s32 %s97, 1
      %s99 = scalar_select %p96, %s97, %s98
      %p102 = pneg %p96
      %p103 = scmp.eq.s32.totalorder %s17, 1
      %p104 = por %p102, %p103
      %p105 = scmp.ne.s32.totalorder %s97, %s100
      %p106 = scmp.eq.s32.totalorder %s17, 0
      %p107 = por %p105, %p106
      %p108 = scmp.ne.s32.totalorder %s97, %s100
      %p109 = scmp.eq.s32.totalorder %s22, 1
      %p110 = por %p108, %p109
      %p111 = scmp.ne.s32.totalorder %s100, %s101
      %p112 = scmp.eq.s32.totalorder %s22, 0
      %p113 = por %p111, %p112
      %p114 = scmp.ne.s32.totalorder %s100, %s101
      %p115 = scmp.eq.s32.totalorder %s23, 1
      %p116 = por %p114, %p115
      %p118 = scmp.ne.s32.totalorder %s101, %s117
      %p119 = scmp.eq.s32.totalorder %s23, 0
      %p120 = por %p118, %p119
      %p121 = scmp.le.s32.totalorder 1, %s17
      %p122 = scmp.lt.s32.totalorder %s17, 3
      %p123 = pnand %p121, %p122
      %p124 = pneg %p123
      // Predicated region
      $region9: #{tpu_custom_call.1} parent=5 // pred_check
        _
      $region10: #{tpu_custom_call.1} parent=5 // pred_check_branch
        %126 = sbr.rel (%p123) target = $region12
      $region11: #{tpu_custom_call.1} parent=5 // pred_region
        %s127 = ssub.s32 %s17, 1
      $region12: #{tpu_custom_call.1} parent=5 // pred_fallthru
        _
      %p128 = scmp.lt.s32.totalorder %s17, 2
      // Predicated region
      $region13: #{tpu_custom_call.1} parent=5 // pred_check
        %p129 = pneg %p128
      $region14: #{tpu_custom_call.1} parent=5 // pred_check_branch
        %131 = sbr.rel (%p129) target = $region16
      $region15: #{tpu_custom_call.1} parent=5 // pred_region
        // Predicated region
        $region17: #{tpu_custom_call.1} parent=15 // pred_check
          %p132 = pneg %p51
        $region18: #{tpu_custom_call.1} parent=15 // pred_check_branch
          %134 = sbr.rel (%p132) target = $region20
        $region19: #{tpu_custom_call.1} parent=15 // pred_region
          %s135 = sand.u32 %s41, 1
          %s136 = scalar_lea.sflag [#allocation3], %s135
          %s137 = sand.u32 %s41, 1
          %s138 = smul.addr %s137, 64
          %s139 = scalar_lea.vmem [#allocation2], %s138
          %s140 = smul.u32 2, %s25
          %s142 = ssub.s32 1024, 1024
          %143 = vsyncadd %s136, %s142
          %s144 = smul.addr %s24, 8
          %s145 = sadd.s32 %s140, %s144
          %s146 = smul.addr %s145, 128
          %s147 = scalar_lea.hbm %s0, %s146
          %s148 = sshll.u32 %s139, 4
          %s149 = int_to_ptr.vmem [resolvable:$true] %s148
          %154 = dma.hbm_to_vmem [thread:$0]  %s147, 1024, %s149, %s136, 128, 128, 8
        $region20: #{tpu_custom_call.1} parent=15 // pred_fallthru
          _
        // Predicated region
        $region21: #{tpu_custom_call.1} parent=15 // pred_check
          %p155 = pneg %p79
        $region22: #{tpu_custom_call.1} parent=15 // pred_check_branch
          %157 = sbr.rel (%p155) target = $region24
        $region23: #{tpu_custom_call.1} parent=15 // pred_region
          %s158 = sand.u32 %s69, 1
          %s159 = scalar_lea.sflag [#allocation6], %s158
          %s160 = sand.u32 %s69, 1
          %s161 = smul.addr %s160, 64
          %s162 = scalar_lea.vmem [#allocation5], %s161
          %s163 = smul.u32 2, %s25
          %s165 = ssub.s32 1024, 1024
          %166 = vsyncadd %s159, %s165
          %s167 = smul.addr %s24, 8
          %s168 = sadd.s32 %s163, %s167
          %s169 = smul.addr %s168, 128
          %s170 = scalar_lea.hbm %s1, %s169
          %s171 = sshll.u32 %s162, 4
          %s172 = int_to_ptr.vmem [resolvable:$true] %s171
          %177 = dma.hbm_to_vmem [thread:$0]  %s170, 1024, %s172, %s159, 128, 128, 8
        $region24: #{tpu_custom_call.1} parent=15 // pred_fallthru
          _
      $region16: #{tpu_custom_call.1} parent=5 // pred_fallthru
        _
      %p178 = scmp.le.s32.totalorder 1, %s17
      %p179 = scmp.lt.s32.totalorder %s17, 3
      %p180 = pnand %p178, %p179
      %p181 = pneg %p180
      // Predicated region
      $region25: #{tpu_custom_call.1} parent=5 // pred_check
        _
      $region26: #{tpu_custom_call.1} parent=5 // pred_check_branch
        %183 = sbr.rel (%p180) target = $region28
      $region27: #{tpu_custom_call.1} parent=5 // pred_region
        %s184 = ssub.s32 %s17, 1
        %s185 = sand.u32 %s44, 1
        %s186 = scalar_lea.sflag [#allocation3], %s185
        %s187 = sand.u32 %s44, 1
        %s188 = smul.addr %s187, 64
        %s189 = scalar_lea.vmem [#allocation2], %s188
        // Predicated region
        $region29: #{tpu_custom_call.1} parent=27 // pred_check
          %p190 = pneg %p57
        $region30: #{tpu_custom_call.1} parent=27 // pred_check_branch
          %192 = sbr.rel (%p190) target = $region32
        $region31: #{tpu_custom_call.1} parent=27 // pred_region
          %193 = dma.done %s186, 1024
        $region32: #{tpu_custom_call.1} parent=27 // pred_fallthru
          _
        %s194 = sand.u32 %s72, 1
        %s195 = scalar_lea.sflag [#allocation6], %s194
        %s196 = sand.u32 %s72, 1
        %s197 = smul.addr %s196, 64
        %s198 = scalar_lea.vmem [#allocation5], %s197
        // Predicated region
        $region33: #{tpu_custom_call.1} parent=27 // pred_check
          %p199 = pneg %p85
        $region34: #{tpu_custom_call.1} parent=27 // pred_check_branch
          %201 = sbr.rel (%p199) target = $region36
        $region35: #{tpu_custom_call.1} parent=27 // pred_region
          %202 = dma.done %s195, 1024
        $region36: #{tpu_custom_call.1} parent=27 // pred_fallthru
          _
        %s203 = sand.u32 %s44, 1
        %s204 = scalar_lea.sflag [#allocation3], %s203
        %s205 = sand.u32 %s44, 1
        %s206 = smul.addr %s205, 64
        %s207 = scalar_lea.vmem [#allocation2], %s206
        %p208 = pneg %p57
        %p209 = pneg %p54
        %s210 = sand.u32 %s72, 1
        %s211 = scalar_lea.sflag [#allocation6], %s210
        %s212 = sand.u32 %s72, 1
        %s213 = smul.addr %s212, 64
        %s214 = scalar_lea.vmem [#allocation5], %s213
        %p215 = pneg %p85
        %p216 = pneg %p82
        %p217 = pneg %p113
        %p218 = pneg %p110
        %s219 = sand.u32 %s100, 1
        %s220 = scalar_lea.sflag [#allocation4], %s219
        %s221 = sand.u32 %s100, 1
        %s222 = smul.addr %s221, 12
        %s223 = scalar_lea.vmem [#allocation7], %s222
        %s224 = smul.u32 2, %s27
        %s225 = smul.u32 2, %s27
        %v226 = vld [vmem:[%s189] sm:$0xff]
        %v227 = vld [vmem:[%s189 + $0x8] sm:$0xff]
        %v228 = vld [vmem:[%s189 + $0x10] sm:$0xff]
        %v229 = vld [vmem:[%s189 + $0x18] sm:$0xff]
        %v230 = vld [vmem:[%s189 + $0x20] sm:$0xff]
        %v231 = vld [vmem:[%s189 + $0x28] sm:$0xff]
        %v232 = vld [vmem:[%s189 + $0x30] sm:$0xff]
        %v233 = vld [vmem:[%s189 + $0x38] sm:$0xff]
        %v234 = vld [vmem:[%s198] sm:$0xff]
        %v235 = vld [vmem:[%s198 + $0x8] sm:$0xff]
        %v236 = vld [vmem:[%s198 + $0x10] sm:$0xff]
        %v237 = vld [vmem:[%s198 + $0x18] sm:$0xff]
        %v238 = vld [vmem:[%s198 + $0x20] sm:$0xff]
        %v239 = vld [vmem:[%s198 + $0x28] sm:$0xff]
        %v240 = vld [vmem:[%s198 + $0x30] sm:$0xff]
        %v241 = vld [vmem:[%s198 + $0x38] sm:$0xff]
        %v242 = vmul.f32 %v226, %v234
        %v243 = vmul.f32 %v227, %v235
        %v244 = vmul.f32 %v228, %v236
        %v245 = vmul.f32 %v229, %v237
        %v246 = vmul.f32 %v230, %v238
        %v247 = vmul.f32 %v231, %v239
        %v248 = vmul.f32 %v232, %v240
        %v249 = vmul.f32 %v233, %v241
        %vm250 = vcmask 130048
        %v251 = vsel %vm250, %v242, 0.0
        %v252 = vsel %vm250, %v243, 0.0
        %v253 = vadd.f32 %v251, %v252
        %v254 = vrot.slane %v253, 4
        %v255 = vadd.f32 %v253, %v254
        %v256 = vrot.slane %v255, 2
        %v257 = vadd.f32 %v255, %v256
        %v258 = vrot.slane %v257, 1
        %v259 = vadd.f32 %v257, %v258
        %v260 = vsel %vm250, %v244, 0.0
        %v261 = vsel %vm250, %v245, 0.0
        %v262 = vadd.f32 %v260, %v261
        %v263 = vrot.slane %v262, 4
        %v264 = vadd.f32 %v262, %v263
        %v265 = vrot.slane %v264, 2
        %v266 = vadd.f32 %v264, %v265
        %v267 = vrot.slane %v266, 1
        %v268 = vadd.f32 %v266, %v267
        %v269 = vsel %vm250, %v246, 0.0
        %v270 = vsel %vm250, %v247, 0.0
        %v271 = vadd.f32 %v269, %v270
        %v272 = vrot.slane %v271, 4
        %v273 = vadd.f32 %v271, %v272
        %v274 = vrot.slane %v273, 2
        %v275 = vadd.f32 %v273, %v274
        %v276 = vrot.slane %v275, 1
        %v277 = vadd.f32 %v275, %v276
        %v278 = vsel %vm250, %v248, 0.0
        %v279 = vsel %vm250, %v249, 0.0
        %v280 = vadd.f32 %v278, %v279
        %v281 = vrot.slane %v280, 4
        %v282 = vadd.f32 %v280, %v281
        %v283 = vrot.slane %v282, 2
        %v284 = vadd.f32 %v282, %v283
        %v285 = vrot.slane %v284, 1
        %v286 = vadd.f32 %v284, %v285
        %v287 = vadd.f32 %v259, 0.0
        %v288 = vadd.f32 %v268, 0.0
        %v289 = vadd.f32 %v277, 0.0
        %v290 = vadd.f32 %v286, 0.0
        %v291 = vmul.f32 %v226, %v226
        %v292 = vmul.f32 %v227, %v227
        %v293 = vmul.f32 %v228, %v228
        %v294 = vmul.f32 %v229, %v229
        %v295 = vmul.f32 %v230, %v230
        %v296 = vmul.f32 %v231, %v231
        %v297 = vmul.f32 %v232, %v232
        %v298 = vmul.f32 %v233, %v233
        %v299 = vsel %vm250, %v291, 0.0
        %v300 = vsel %vm250, %v292, 0.0
        %v301 = vadd.f32 %v299, %v300
        %v302 = vrot.slane %v301, 4
        %v303 = vadd.f32 %v301, %v302
        %v304 = vrot.slane %v303, 2
        %v305 = vadd.f32 %v303, %v304
        %v306 = vrot.slane %v305, 1
        %v307 = vadd.f32 %v305, %v306
        %v308 = vsel %vm250, %v293, 0.0
        %v309 = vsel %vm250, %v294, 0.0
        %v310 = vadd.f32 %v308, %v309
        %v311 = vrot.slane %v310, 4
        %v312 = vadd.f32 %v310, %v311
        %v313 = vrot.slane %v312, 2
        %v314 = vadd.f32 %v312, %v313
        %v315 = vrot.slane %v314, 1
        %v316 = vadd.f32 %v314, %v315
        %v317 = vsel %vm250, %v295, 0.0
        %v318 = vsel %vm250, %v296, 0.0
        %v319 = vadd.f32 %v317, %v318
        %v320 = vrot.slane %v319, 4
        %v321 = vadd.f32 %v319, %v320
        %v322 = vrot.slane %v321, 2
        %v323 = vadd.f32 %v321, %v322
        %v324 = vrot.slane %v323, 1
        %v325 = vadd.f32 %v323, %v324
        %v326 = vsel %vm250, %v297, 0.0
        %v327 = vsel %vm250, %v298, 0.0
        %v328 = vadd.f32 %v326, %v327
        %v329 = vrot.slane %v328, 4
        %v330 = vadd.f32 %v328, %v329
        %v331 = vrot.slane %v330, 2
        %v332 = vadd.f32 %v330, %v331
        %v333 = vrot.slane %v332, 1
        %v334 = vadd.f32 %v332, %v333
        %v335 = vadd.f32 %v307, 0.0
        %v336 = vadd.f32 %v316, 0.0
        %v337 = vadd.f32 %v325, 0.0
        %v338 = vadd.f32 %v334, 0.0
        %v339 = vmul.f32 %v234, %v234
        %v340 = vmul.f32 %v235, %v235
        %v341 = vmul.f32 %v236, %v236
        %v342 = vmul.f32 %v237, %v237
        %v343 = vmul.f32 %v238, %v238
        %v344 = vmul.f32 %v239, %v239
        %v345 = vmul.f32 %v240, %v240
        %v346 = vmul.f32 %v241, %v241
        %v347 = vsel %vm250, %v339, 0.0
        %v348 = vsel %vm250, %v340, 0.0
        %v349 = vadd.f32 %v347, %v348
        %v350 = vrot.slane %v349, 4
        %v351 = vadd.f32 %v349, %v350
        %v352 = vrot.slane %v351, 2
        %v353 = vadd.f32 %v351, %v352
        %v354 = vrot.slane %v353, 1
        %v355 = vadd.f32 %v353, %v354
        %v356 = vsel %vm250, %v341, 0.0
        %v357 = vsel %vm250, %v342, 0.0
        %v358 = vadd.f32 %v356, %v357
        %v359 = vrot.slane %v358, 4
        %v360 = vadd.f32 %v358, %v359
        %v361 = vrot.slane %v360, 2
        %v362 = vadd.f32 %v360, %v361
        %v363 = vrot.slane %v362, 1
        %v364 = vadd.f32 %v362, %v363
        %v365 = vsel %vm250, %v343, 0.0
        %v366 = vsel %vm250, %v344, 0.0
        %v367 = vadd.f32 %v365, %v366
        %v368 = vrot.slane %v367, 4
        %v369 = vadd.f32 %v367, %v368
        %v370 = vrot.slane %v369, 2
        %v371 = vadd.f32 %v369, %v370
        %v372 = vrot.slane %v371, 1
        %v373 = vadd.f32 %v371, %v372
        %v374 = vsel %vm250, %v345, 0.0
        %v375 = vsel %vm250, %v346, 0.0
        %v376 = vadd.f32 %v374, %v375
        %v377 = vrot.slane %v376, 4
        %v378 = vadd.f32 %v376, %v377
        %v379 = vrot.slane %v378, 2
        %v380 = vadd.f32 %v378, %v379
        %v381 = vrot.slane %v380, 1
        %v382 = vadd.f32 %v380, %v381
        %v383 = vadd.f32 %v355, 0.0
        %v384 = vadd.f32 %v364, 0.0
        %v385 = vadd.f32 %v373, 0.0
        %v386 = vadd.f32 %v382, 0.0
        %vm391 = vcmask 1041409
        %v392 = vsel %vm391, %v288, %v287
        %vm393 = vcmask 1042434
        %v394 = vsel %vm393, %v289, %v392
        %vm395 = vcmask 1043459
        %v396 = vsel %vm395, %v290, %v394
        %vm398 = vcmask 125952
        %399 = vst.msk [vmem:[%s223] sm:$0xf] %vm398, %v396
        %v404 = vsel %vm391, %v336, %v335
        %v405 = vsel %vm393, %v337, %v404
        %v406 = vsel %vm395, %v338, %v405
        %s408 = scalar_lea.vmem %s223, 4 [#allocation7]
        %409 = vst.msk [vmem:[%s408] sm:$0xf] %vm398, %v406
        %v414 = vsel %vm391, %v384, %v383
        %v415 = vsel %vm393, %v385, %v414
        %v416 = vsel %vm395, %v386, %v415
        %s418 = scalar_lea.vmem %s223, 8 [#allocation7]
        %419 = vst.msk [vmem:[%s418] sm:$0xf] %vm398, %v416
        %s420 = sand.u32 %s100, 1
        %s421 = scalar_lea.sflag [#allocation4], %s420
        %s422 = sand.u32 %s100, 1
        %s423 = smul.addr %s422, 12
        %s424 = scalar_lea.vmem [#allocation7], %s423
        // Predicated region
        $region37: #{tpu_custom_call.1} parent=27 // pred_check
          %p425 = pneg %p110
        $region38: #{tpu_custom_call.1} parent=27 // pred_check_branch
          %427 = sbr.rel (%p425) target = $region40
        $region39: #{tpu_custom_call.1} parent=27 // pred_region
          %s429 = ssub.s32 192, 192
          %430 = vsyncadd %s421, %s429
          %s431 = smul.addr %s27, 3
          %s432 = smul.addr %s26, 3
          %s433 = sadd.s32 %s431, %s432
          %s434 = smul.addr %s433, 64
          %s435 = scalar_lea.hbm %s2, %s434
          %s436 = sshll.u32 %s424, 4
          %s437 = int_to_ptr.vmem [resolvable:$true] %s436
          %442 = dma.vmem_to_hbm [thread:$0]  %s437, 192, %s435, %s421, 64, 64, 4
        $region40: #{tpu_custom_call.1} parent=27 // pred_fallthru
          _
      $region28: #{tpu_custom_call.1} parent=5 // pred_fallthru
        _
      %p443 = scmp.le.s32.totalorder 2, %s17
      // Predicated region
      $region41: #{tpu_custom_call.1} parent=5 // pred_check
        %p444 = pneg %p443
      $region42: #{tpu_custom_call.1} parent=5 // pred_check_branch
        %446 = sbr.rel (%p444) target = $region44
      $region43: #{tpu_custom_call.1} parent=5 // pred_region
        %s447 = ssub.s32 %s17, 2
        // Predicated region
        $region45: #{tpu_custom_call.1} parent=43 // pred_check
          %p448 = pneg %p116
        $region46: #{tpu_custom_call.1} parent=43 // pred_check_branch
          %450 = sbr.rel (%p448) target = $region48
        $region47: #{tpu_custom_call.1} parent=43 // pred_region
          %s451 = sand.u32 %s101, 1
          %s452 = scalar_lea.sflag [#allocation4], %s451
          %s453 = sand.u32 %s101, 1
          %s454 = smul.addr %s453, 12
          %s455 = scalar_lea.vmem [#allocation7], %s454
          %456 = dma.done %s452, 192
        $region48: #{tpu_custom_call.1} parent=43 // pred_fallthru
          _
      $region44: #{tpu_custom_call.1} parent=5 // pred_fallthru
        _
    $region6: #{tpu_custom_call.1} parent=1 // loop_footer
      %s21 = sadd.s32 1, %s17
    $region7: #{tpu_custom_call.1} parent=1 // loop_footer_branch
      %16 = sbr.rel target = $region3
    $region8: #{tpu_custom_call.1} parent=1 // loop_exit
      _
    %457 = vsyncpa [#allocation3], 1
    %s458 = scalar_lea.sflag [#allocation3], 1
    %459 = vsyncpa %s458, 1
    %460 = vsyncpa [#allocation6], 1
    %s461 = scalar_lea.sflag [#allocation6], 1
    %462 = vsyncpa %s461, 1
    %463 = vsyncpa [#allocation4], 1
    %s464 = scalar_lea.sflag [#allocation4], 1
    %465 = vsyncpa %s464, 1

</llo_original>
